<compile_context>
chip_gen: v6e
topology: v6e:2x2x1
jax: 0.10.0
libtpu: 0.0.40
codegen_flags: <defaults>
</compile_context>

<pallas_src>
import jax
import jax.numpy as jnp
from jax import lax
from jax.experimental import pallas as pl
from jax.experimental.pallas import tpu as pltpu


def _round_up(v, m):
    return ((v + m - 1) // m) * m


def _knn_loss_kernel(x_ref, y_ref, loss_ref):
    # x_ref: (TB, C) logits (native dtype), y_ref: (TB, K) int32 class indices,
    # loss_ref: (TB, 1) per-row -log(sum_k preds[row, y[row, k]] + eps).
    x = x_ref[...].astype(jnp.float32)            # upcast in-kernel; DMA stays narrow
    TB, C = x.shape
    y = y_ref[...]                                # (TB, K) int32
    K = y.shape[1]

    # Row-wise stable softmax numerator / denominator. The full softmax is not
    # materialized -- gather on the numerator, divide once per row.
    m = jnp.max(x, axis=1, keepdims=True)         # (TB, 1)
    e = jnp.exp(x - m)                            # (TB, C)
    denom = jnp.sum(e, axis=1, keepdims=True)     # (TB, 1)

    # Multi-hot count mask over classes: K static VPU compares/adds (correctly
    # double-counts duplicate indices, matching torch.gather(...).sum(1)),
    # then a single XLU cross-lane reduction.
    col_ids = lax.broadcasted_iota(jnp.int32, (TB, C), 1)
    count = jnp.zeros((TB, C), jnp.float32)
    for k in range(K):                            # K is tiny and static -> unrolled
        count = count + (col_ids == y[:, k:k + 1]).astype(jnp.float32)

    num = jnp.sum(e * count, axis=1, keepdims=True)           # (TB, 1)
    gathered = num * pl.reciprocal(denom, approx=False)       # == gather(preds).sum(1)
    loss_ref[...] = -jnp.log(gathered + jnp.float32(1e-7))


def knn_criterion(x, y, epoch, nn_num=5, nn_epoch=20, block_b=256):
    """JAX/Pallas equivalent of KNNCriterion.forward(x, y, epoch)."""
    B, C = x.shape
    if epoch <= nn_epoch:
        assert y.size == B, "expected one label per sample"
        K = 1
    else:
        assert y.size == B * (nn_num + 1), "expected nn_num+1 labels per sample"
        K = nn_num + 1
    y2 = y.reshape(B, K).astype(jnp.int32)

    # Batch tile: multiple of 8 sublanes, capped at block_b so double-buffered
    # f32 tiles stay comfortably inside even v7x's smaller VMEM for moderate C.
    tb = min(_round_up(B, 8), _round_up(block_b, 8))
    b_pad = _round_up(B, tb)
    if b_pad != B:
        # Zero-padded rows give a finite loss that is discarded by the [:B] slice.
        x = jnp.pad(x, ((0, b_pad - B), (0, 0)))
        y2 = jnp.pad(y2, ((0, b_pad - B), (0, 0)))

    per_row = pl.pallas_call(
        _knn_loss_kernel,
        out_shape=jax.ShapeDtypeStruct((b_pad, 1), jnp.float32),
        grid=(b_pad // tb,),
        in_specs=[
            pl.BlockSpec((tb, C), lambda i: (i, 0)),   # logits tile rides the pipeline
            pl.BlockSpec((tb, K), lambda i: (i, 0)),   # y tiled alongside (tiny per tile)
        ],
        out_specs=pl.BlockSpec((tb, 1), lambda i: (i, 0)),
        compiler_params=pltpu.CompilerParams(
            dimension_semantics=("parallel",)),        # independent tiles -> megacore-shardable
    )(x, y2)
    # TODO(synk): for vocab-scale C, add a class-axis grid with an online softmax
    # (running max / running sum / running gathered-numerator scratch) instead of
    # one full-C block per tile.
    return jnp.sum(per_row[:B, 0]) / jnp.float32(B)


def _reference(x, y, epoch, nn_num=5, nn_epoch=20):
    """Pure-JAX reference mirroring the PyTorch module."""
    eps = 1e-7
    B = x.shape[0]
    preds = jax.nn.softmax(x.astype(jnp.float32), axis=1)
    K = 1 if epoch <= nn_epoch else nn_num + 1
    idx = y.reshape(B, K)
    gathered = jnp.take_along_axis(preds, idx, axis=1)        # (B, K)
    return (-jnp.log(gathered.sum(axis=1) + eps)).sum() / B


if __name__ == "__main__":
    key = jax.random.PRNGKey(0)
    kx, ky1, ky2, kx3, ky3 = jax.random.split(key, 5)

    B, C = 8, 10                      # CIFAR-10-like: 8 samples, 10 classes
    nn_num, nn_epoch = 5, 20

    x = jax.random.normal(kx, (B, C), dtype=jnp.float32)
    y_single = jax.random.randint(ky1, (B,), 0, C, dtype=jnp.int32)
    y_knn = jax.random.randint(ky2, (B, nn_num + 1), 0, C, dtype=jnp.int32)

    # Branch 1: epoch <= nn_epoch (single positive index per sample).
    loss1 = knn_criterion(x, y_single, epoch=5, nn_num=nn_num, nn_epoch=nn_epoch)
    jax.block_until_ready(loss1)
    ref1 = _reference(x, y_single, epoch=5, nn_num=nn_num, nn_epoch=nn_epoch)
    assert jnp.allclose(loss1, ref1, rtol=1e-5, atol=1e-5), (loss1, ref1)

    # Branch 2: epoch > nn_epoch (nn_num + 1 indices per sample).
    loss2 = knn_criterion(x, y_knn, epoch=30, nn_num=nn_num, nn_epoch=nn_epoch)
    jax.block_until_ready(loss2)
    ref2 = _reference(x, y_knn, epoch=30, nn_num=nn_num, nn_epoch=nn_epoch)
    assert jnp.allclose(loss2, ref2, rtol=1e-5, atol=1e-5), (loss2, ref2)

    # Branch 3: exercises the multi-tile grid + batch padding path
    # (B=20 with a 16-row tile -> 2 grid steps, 12 padded rows discarded).
    B3 = 20
    x3 = jax.random.normal(kx3, (B3, C), dtype=jnp.float32)
    y3 = jax.random.randint(ky3, (B3, nn_num + 1), 0, C, dtype=jnp.int32)
    loss3 = knn_criterion(x3, y3, epoch=30, nn_num=nn_num, nn_epoch=nn_epoch, block_b=16)
    jax.block_until_ready(loss3)
    ref3 = _reference(x3, y3, epoch=30, nn_num=nn_num, nn_epoch=nn_epoch)
    assert jnp.allclose(loss3, ref3, rtol=1e-5, atol=1e-5), (loss3, ref3)

    print("KERNEL_OK")
</pallas_src>

<mosaic_0001>
module attributes {stable_mosaic.version = 11 : i64} {
  func.func @_knn_loss_kernel(%arg0: i32, %arg1: memref<8x10xf32, #tpu.memory_space<vmem>>, %arg2: memref<8x1xi32, #tpu.memory_space<vmem>>, %arg3: memref<8x1xf32, #tpu.memory_space<vmem>>) attributes {dimension_semantics = [#tpu.dimension_semantics<parallel>], iteration_bounds = array<i64: 1>, scalar_prefetch = 0 : i64, scratch_operands = 0 : i64, tpu.core_type = #tpu.core_type<tc>, window_params = [{transform_indices = @transform_0, window_bounds = array<i64: 8, 10>}, {transform_indices = @transform_1, window_bounds = array<i64: 8, 1>}, {transform_indices = @transform_2, window_bounds = array<i64: 8, 1>}]} {
    %c0 = arith.constant 0 : index
    %c0_0 = arith.constant 0 : index
    %0 = vector.load %arg1[%c0, %c0_0] : memref<8x10xf32, #tpu.memory_space<vmem>>, vector<8x10xf32>
    %c0_1 = arith.constant 0 : index
    %c0_2 = arith.constant 0 : index
    %1 = vector.load %arg2[%c0_1, %c0_2] : memref<8x1xi32, #tpu.memory_space<vmem>>, vector<8x1xi32>
    %cst = arith.constant dense<0xFF800000> : vector<8xf32>
    %2 = vector.multi_reduction <maximumf>, %0, %cst [1] : vector<8x10xf32> to vector<8xf32>
    %3 = vector.shape_cast %2 : vector<8xf32> to vector<8x1xf32>
    %4 = vector.broadcast %3 : vector<8x1xf32> to vector<8x10xf32>
    %5 = arith.subf %0, %4 : vector<8x10xf32>
    %6 = math.exp %5 : vector<8x10xf32>
    %cst_3 = arith.constant dense<0.000000e+00> : vector<8xf32>
    %7 = vector.multi_reduction <add>, %6, %cst_3 [1] : vector<8x10xf32> to vector<8xf32>
    %8 = vector.shape_cast %7 : vector<8xf32> to vector<8x1xf32>
    %9 = tpu.iota {dimensions = array<i32: 1>} : vector<8x10xi32>
    %cst_4 = arith.constant 0.000000e+00 : f32
    %10 = vector.broadcast %cst_4 : f32 to vector<8x10xf32>
    %11 = vector.broadcast %1 : vector<8x1xi32> to vector<8x10xi32>
    %12 = arith.cmpi eq, %9, %11 : vector<8x10xi32>
    %13 = arith.extui %12 : vector<8x10xi1> to vector<8x10xi32>
    %14 = arith.sitofp %13 : vector<8x10xi32> to vector<8x10xf32>
    %15 = arith.addf %10, %14 : vector<8x10xf32>
    %16 = arith.mulf %6, %15 : vector<8x10xf32>
    %cst_5 = arith.constant dense<0.000000e+00> : vector<8xf32>
    %17 = vector.multi_reduction <add>, %16, %cst_5 [1] : vector<8x10xf32> to vector<8xf32>
    %18 = vector.shape_cast %17 : vector<8xf32> to vector<8x1xf32>
    %19 = tpu.reciprocal %8 : vector<8x1xf32> -> vector<8x1xf32>
    %20 = arith.mulf %18, %19 : vector<8x1xf32>
    %cst_6 = arith.constant 1.000000e-07 : f32
    %21 = vector.broadcast %cst_6 : f32 to vector<8x1xf32>
    %22 = arith.addf %20, %21 : vector<8x1xf32>
    %23 = math.log %22 : vector<8x1xf32>
    %cst_7 = arith.constant 0.000000e+00 : f32
    %24 = vector.broadcast %cst_7 : f32 to vector<8x1xf32>
    %25 = arith.subf %24, %23 : vector<8x1xf32>
    %c0_8 = arith.constant 0 : index
    %c0_9 = arith.constant 0 : index
    %26 = vector.load %arg3[%c0_8, %c0_9] : memref<8x1xf32, #tpu.memory_space<vmem>>, vector<8x1xf32>
    tpu.vector_store %arg3[%c0_8, %c0_9], %25 {strides = array<i32>} : memref<8x1xf32, #tpu.memory_space<vmem>>, vector<8x1xf32>,
    return
  }
  func.func @transform_0(%arg0: i32) -> (i32, i32) {
    %c0_i32 = arith.constant 0 : i32
    %c0_i32_0 = arith.constant 0 : i32
    return %arg0, %c0_i32 : i32, i32
  }
  func.func @transform_1(%arg0: i32) -> (i32, i32) {
    %c0_i32 = arith.constant 0 : i32
    %c0_i32_0 = arith.constant 0 : i32
    return %arg0, %c0_i32 : i32, i32
  }
  func.func @transform_2(%arg0: i32) -> (i32, i32) {
    %c0_i32 = arith.constant 0 : i32
    %c0_i32_0 = arith.constant 0 : i32
    return %arg0, %c0_i32 : i32, i32
  }
}

</mosaic_0001>

<llo_original>
// kernel: tpu_custom_call.1
$region0: #{tpu_custom_call.1}
  #allocation0 [shape = 'u32[]', space=smem, size = 0x4, offset = 0x4, fixed_abs, tag = 'smem constant byte address 0x4 - core index']
  #allocation1 [shape = 'u32[144,128]{1,0:T(1,128)}', space=vmem, size = 0x12000, scoped, tag = 'internal scratch']
  %s0 = inlined_call_operand.vmem [shape: f32[8,10], index: 0, kind: input, shape index: {}]
  %s1 = inlined_call_operand.vmem [shape: s32[8,1], index: 1, kind: input, shape index: {}]
  %s2 = inlined_call_operand.vmem [shape: f32[8,1], index: 2, kind: output, shape index: {}]
  %s3 = sld [smem:[#allocation0]]
  $region18: #{tpu_custom_call.1} parent=0
    _
  %s5 = ssub.s32 1, %s3
  %s6 = scalar_select 0, %s5, %s3
  // Predicated region
  $region2: #{tpu_custom_call.1} parent=0 // pred_check
    _
  $region3: #{tpu_custom_call.1} parent=0 // pred_check_branch
    %8 = sbr.rel (0) target = $region5
  $region4: #{tpu_custom_call.1} parent=0 // pred_region
    _
  $region5: #{tpu_custom_call.1} parent=0 // pred_fallthru
    _
  // Predicated region
  $region6: #{tpu_custom_call.1} parent=0 // pred_check
    _
  $region7: #{tpu_custom_call.1} parent=0 // pred_check_branch
    %10 = sbr.rel (0) target = $region9
  $region8: #{tpu_custom_call.1} parent=0 // pred_region
    _
  $region9: #{tpu_custom_call.1} parent=0 // pred_fallthru
    _
  %v11 = vld [vmem:[%s0] sm:$0xff]
  %v12 = vld [vmem:[%s1] sm:$0xff]
  %vm13 = vcmask 80896
  %v14 = vsel %vm13, %v11, -inf
  %15 = vmax.xlane.f32.xlu0 %v14
  %v16 = vpop.xlane.xlu0 %15
  %v17 = vsub.f32 %v11, %v16
  %v18 = vmul.f32 %v17, 1.442695
  %v19 = vpow.pop %v18
  %v20 = vsel %vm13, %v19, 0.0
  %21 = vadd.xlane.f32.xlu0 %v20
  %v22 = vpop.xlane.xlu0 %21
  %v23 = vlaneseq
  %v24 = vand.u32 %v23, 127
  %25 = vset.pattern.permute.xlu0 0
  %26 = vperm.xlu0 %25, %v12
  %v27 = vpop.permute.xlu0 %26
  %vm28 = vcmp.eq.s32.totalorder %v24, %v27
  %v29 = vsel %vm28, 1, 0
  %v30 = vcvt.s32.f32 %v29
  %v31 = vadd.f32 %v30, 0.0
  %v32 = vmul.f32 %v19, %v31
  %v33 = vsel %vm13, %v32, 0.0
  %34 = vadd.xlane.f32.xlu0 %v33
  %v35 = vpop.xlane.xlu0 %34
  %v36 = vrcp.pop %v22
  %v37 = vmul.f32 %v35, %v36
  %v38 = vadd.f32 %v37, 1e-07
  %v39 = vlog2.pop %v38
  %v40 = vmul.f32 %v39, 0.6931472
  %v41 = vsub.f32 0.0, %v40
  %vm42 = vcmask 7168
  %43 = vst.msk [vmem:[%s2] sm:$0xff] %vm42, %v41
  // Predicated region
  $region10: #{tpu_custom_call.1} parent=0 // pred_check
    _
  $region11: #{tpu_custom_call.1} parent=0 // pred_check_branch
    %45 = sbr.rel (0) target = $region13
  $region12: #{tpu_custom_call.1} parent=0 // pred_region
    _
  $region13: #{tpu_custom_call.1} parent=0 // pred_fallthru
    _
  // Predicated region
  $region14: #{tpu_custom_call.1} parent=0 // pred_check
    _
  $region15: #{tpu_custom_call.1} parent=0 // pred_check_branch
    %47 = sbr.rel (0) target = $region17
  $region16: #{tpu_custom_call.1} parent=0 // pred_region
    _
  $region17: #{tpu_custom_call.1} parent=0 // pred_fallthru
    _

</llo_original>
